<compile_context>
chip_gen: v6e
topology: v6e:2x2x1
jax: 0.10.0
libtpu: 0.0.40
codegen_flags: <defaults>
</compile_context>

<pallas_src>
import jax
import jax.numpy as jnp
from jax.experimental import pallas as pl
from jax.experimental.pallas import tpu as pltpu


def _round_up(v, m):
    return (v + m - 1) // m * m


def _pick_tile(total, unit, max_tile):
    """Largest multiple of `unit` that divides `total` and is <= max_tile."""
    m = total // unit
    best = 1
    for cand in range(1, m + 1):
        if m % cand == 0 and cand * unit <= max_tile:
            best = cand
    return best * unit


def prepare_mycell_params(weight, bias, *, param_dtype=None):
    """One-time parameter preparation (hoist OUT of any timestep loop).

    weight: (OUT, IN) PyTorch Linear layout; bias: (OUT,).
    Pads OUT/IN to multiples of 128, stores the weight transposed as (IN_p, OUT_p)
    so the kernel contracts with a plain NN dot (no in-kernel transpose), and casts
    to `param_dtype` (e.g. jnp.bfloat16) exactly once.
    """
    OUT, IN = weight.shape
    assert bias.shape == (OUT,)
    if param_dtype is None:
        param_dtype = weight.dtype
    Np = _round_up(OUT, 128)
    Kp = _round_up(IN, 128)
    w_t = jnp.pad(weight, ((0, Np - OUT), (0, Kp - IN))).T.astype(param_dtype)  # (Kp, Np)
    b_p = jnp.pad(bias, (0, Np - OUT)).reshape(1, Np).astype(param_dtype)       # (1, Np)
    return {"w_t": w_t, "b": b_p, "out_features": OUT, "in_features": IN}


def _mycell_kernel_1k(x_ref, w_ref, b_ref, h_ref, o_ref):
    # Whole IN axis in one tile: no accumulator scratch, no pl.when phases.
    acc = jnp.dot(x_ref[...], w_ref[...], preferred_element_type=jnp.float32)
    acc = acc + b_ref[...].astype(jnp.float32)
    o_ref[...] = jnp.tanh(acc + h_ref[...].astype(jnp.float32)).astype(o_ref.dtype)


def _mycell_kernel_acc(x_ref, w_ref, b_ref, h_ref, o_ref, acc_ref):
    # Reduction over IN split across the last grid axis; f32 VMEM accumulator.
    k = pl.program_id(2)

    @pl.when(k == 0)
    def _():
        # Bias folded into the accumulator init (single broadcast, no per-k add).
        acc_ref[...] = jnp.broadcast_to(b_ref[...].astype(jnp.float32), acc_ref.shape)

    acc_ref[...] += jnp.dot(x_ref[...], w_ref[...], preferred_element_type=jnp.float32)

    @pl.when(k == pl.num_programs(2) - 1)
    def _():
        o_ref[...] = jnp.tanh(
            acc_ref[...] + h_ref[...].astype(jnp.float32)).astype(o_ref.dtype)


def mycell_forward(x, h, params, *, tn_max=512, tk_max=2048):
    """new_h = tanh(x @ W.T + b + h); returns (new_h, new_h) like MyCell.forward.

    x: (B, IN), h: (B, OUT); params from prepare_mycell_params (weight already
    padded / transposed / cast — no per-call weight traffic besides the kernel's
    own single HBM stream).
    """
    OUT, IN = params["out_features"], params["in_features"]
    w_t, b_p = params["w_t"], params["b"]
    Kp, Np = w_t.shape
    B, IN_x = x.shape
    assert IN_x == IN and h.shape == (B, OUT)
    out_dtype = x.dtype

    # --- Generation-aware VMEM budget (v5e/v6e: 128 MiB, v7x: 64 MiB physical). ---
    try:
        vmem_physical = int(pltpu.get_tpu_info().vmem_capacity_bytes)
    except Exception:
        vmem_physical = 64 << 20  # conservative (v7x per-core)
    vmem_cap = min(56 << 20, (vmem_physical * 7) // 8)   # never exceed v7x-safe cap
    work_budget = min(vmem_cap - (8 << 20), 48 << 20)    # headroom for compiler scratch

    # Lane-dense tiles that divide the (already padded) parameter dims.
    tn = _pick_tile(Np, 128, tn_max)
    tk = _pick_tile(Kp, 128, tk_max)

    x_item = jnp.dtype(w_t.dtype).itemsize   # x is cast once (below) to the MXU dtype
    w_item = jnp.dtype(w_t.dtype).itemsize
    h_item = jnp.dtype(h.dtype).itemsize
    o_item = jnp.dtype(out_dtype).itemsize

    def step_bytes(tb_):
        # double-buffered x, w, bias, h, out tiles + f32 accumulator
        return (2 * (tb_ * tk * x_item + tk * tn * w_item + tn * w_item
                     + tb_ * tn * h_item + tb_ * tn * o_item)
                + tb_ * tn * 4)

    # Stream the weight from HBM exactly once: cover the whole batch in one tile
    # whenever it fits the VMEM budget; otherwise halve until it does.
    tb = _round_up(B, 8)
    while tb > 8 and step_bytes(tb) > work_budget:
        tb = _round_up(tb // 2, 8)
    Bp = _round_up(B, tb)

    # v7x megacore: keep >=2 iterations on a "parallel" axis when the batch is one tile.
    if Bp // tb == 1 and Np // tn == 1 and Np >= 256:
        tn = _pick_tile(Np, 128, Np // 2)

    grid_b, grid_n, grid_k = Bp // tb, Np // tn, Kp // tk

    # Per-call activation prep only (cheap vs. the weight): pad + one-time MXU cast.
    xp = jnp.pad(x, ((0, Bp - B), (0, Kp - IN))).astype(w_t.dtype)
    hp = jnp.pad(h, ((0, Bp - B), (0, Np - OUT)))

    vmem_limit = int(min(max(step_bytes(tb) + (8 << 20), 32 << 20), vmem_cap))

    if grid_k == 1:
        out_p = pl.pallas_call(
            _mycell_kernel_1k,
            out_shape=jax.ShapeDtypeStruct((Bp, Np), out_dtype),
            grid=(grid_b, grid_n),
            in_specs=[
                pl.BlockSpec((tb, tk), lambda i, j: (i, 0)),   # x tile (full IN)
                pl.BlockSpec((tk, tn), lambda i, j: (0, j)),   # weight (IN, OUT), pre-laid-out
                pl.BlockSpec((1, tn), lambda i, j: (0, j)),    # bias row
                pl.BlockSpec((tb, tn), lambda i, j: (i, j)),   # h tile
            ],
            out_specs=pl.BlockSpec((tb, tn), lambda i, j: (i, j)),
            compiler_params=pltpu.CompilerParams(
                dimension_semantics=("parallel", "parallel"),
                vmem_limit_bytes=vmem_limit),
        )(xp, w_t, b_p, hp)
    else:
        out_p = pl.pallas_call(
            _mycell_kernel_acc,
            out_shape=jax.ShapeDtypeStruct((Bp, Np), out_dtype),
            grid=(grid_b, grid_n, grid_k),
            in_specs=[
                pl.BlockSpec((tb, tk), lambda i, j, k: (i, k)),   # x tile
                pl.BlockSpec((tk, tn), lambda i, j, k: (k, j)),   # weight (IN, OUT)
                pl.BlockSpec((1, tn), lambda i, j, k: (0, j)),    # bias row
                pl.BlockSpec((tb, tn), lambda i, j, k: (i, j)),   # h tile
            ],
            out_specs=pl.BlockSpec((tb, tn), lambda i, j, k: (i, j)),
            scratch_shapes=[pltpu.VMEM((tb, tn), jnp.float32)],
            compiler_params=pltpu.CompilerParams(
                dimension_semantics=("parallel", "parallel", "arbitrary"),
                vmem_limit_bytes=vmem_limit),
        )(xp, w_t, b_p, hp)

    new_h = out_p[:B, :OUT]
    return new_h, new_h


if __name__ == "__main__":
    key = jax.random.PRNGKey(0)
    kx, kh, kw, kb = jax.random.split(key, 4)

    # --- MyCell-sized test: Linear(4, 4), x/h of shape (3, 4) ---
    B, IN, OUT = 3, 4, 4
    x = jax.random.uniform(kx, (B, IN), dtype=jnp.float32)
    h = jax.random.uniform(kh, (B, OUT), dtype=jnp.float32)
    weight = jax.random.uniform(kw, (OUT, IN), dtype=jnp.float32) * 0.5 - 0.25
    bias = jax.random.uniform(kb, (OUT,), dtype=jnp.float32) * 0.5 - 0.25

    ref = jnp.tanh(x @ weight.T + bias + h)

    # f32 parameter path — tight-tolerance correctness (single-K fast path).
    params_f32 = prepare_mycell_params(weight, bias, param_dtype=jnp.float32)
    new_h, new_h2 = mycell_forward(x, h, params_f32)
    jax.block_until_ready(new_h)
    assert new_h.shape == (B, OUT)
    assert jnp.allclose(new_h, ref, atol=1e-5), "f32 path mismatch vs reference"
    assert jnp.array_equal(new_h, new_h2)

    # bf16 parameter path (half the weight HBM bytes, 2x MXU feed; f32 accumulate/tanh).
    params_bf16 = prepare_mycell_params(weight, bias, param_dtype=jnp.bfloat16)
    new_h_bf16, _ = mycell_forward(x, h, params_bf16)
    jax.block_until_ready(new_h_bf16)
    assert jnp.allclose(new_h_bf16, ref, atol=2e-2), "bf16 path mismatch vs reference"

    # --- Secondary check exercising the multi-K accumulator path (grid_k > 1). ---
    k2 = jax.random.split(key, 8)
    B2, IN2, OUT2 = 5, 384, 256
    x2 = jax.random.uniform(k2[4], (B2, IN2), dtype=jnp.float32)
    h2 = jax.random.uniform(k2[5], (B2, OUT2), dtype=jnp.float32)
    w2 = (jax.random.uniform(k2[6], (OUT2, IN2), dtype=jnp.float32) - 0.5) * 0.1
    b2 = (jax.random.uniform(k2[7], (OUT2,), dtype=jnp.float32) - 0.5) * 0.1
    ref2 = jnp.tanh(x2 @ w2.T + b2 + h2)
    params2 = prepare_mycell_params(w2, b2, param_dtype=jnp.float32)
    out2, _ = mycell_forward(x2, h2, params2, tn_max=128, tk_max=128)  # forces grid_k=3
    jax.block_until_ready(out2)
    assert jnp.allclose(out2, ref2, atol=1e-4), "multi-K accumulator path mismatch"

    print("KERNEL_OK")
</pallas_src>

<mosaic_0001>
module attributes {stable_mosaic.version = 11 : i64} {
  func.func @_mycell_kernel_1k(%arg0: i32, %arg1: i32, %arg2: memref<8x128xf32, #tpu.memory_space<vmem>>, %arg3: memref<128x128xf32, #tpu.memory_space<vmem>>, %arg4: memref<1x128xf32, #tpu.memory_space<vmem>>, %arg5: memref<8x128xf32, #tpu.memory_space<vmem>>, %arg6: memref<8x128xf32, #tpu.memory_space<vmem>>) attributes {dimension_semantics = [#tpu.dimension_semantics<parallel>, #tpu.dimension_semantics<parallel>], iteration_bounds = array<i64: 1, 1>, scalar_prefetch = 0 : i64, scratch_operands = 0 : i64, tpu.core_type = #tpu.core_type<tc>, window_params = [{transform_indices = @transform_0, window_bounds = array<i64: 8, 128>}, {transform_indices = @transform_1, window_bounds = array<i64: 128, 128>}, {transform_indices = @transform_2, window_bounds = array<i64: 1, 128>}, {transform_indices = @transform_3, window_bounds = array<i64: 8, 128>}, {transform_indices = @transform_4, window_bounds = array<i64: 8, 128>}]} {
    %c0 = arith.constant 0 : index
    %c0_0 = arith.constant 0 : index
    %0 = vector.load %arg2[%c0, %c0_0] : memref<8x128xf32, #tpu.memory_space<vmem>>, vector<8x128xf32>
    %c0_1 = arith.constant 0 : index
    %c0_2 = arith.constant 0 : index
    %1 = vector.load %arg3[%c0_1, %c0_2] : memref<128x128xf32, #tpu.memory_space<vmem>>, vector<128x128xf32>
    %cst = arith.constant dense<0.000000e+00> : vector<8x128xf32>
    %2 = tpu.matmul %0, %1, %cst {dimension_numbers = #tpu.dot_dimension_numbers<[1], [0], [0], [1], [0, 0, 1, 1], [], []>} : vector<8x128xf32>, vector<128x128xf32>, vector<8x128xf32> -> vector<8x128xf32>
    %c0_3 = arith.constant 0 : index
    %c0_4 = arith.constant 0 : index
    %3 = vector.load %arg4[%c0_3, %c0_4] : memref<1x128xf32, #tpu.memory_space<vmem>>, vector<1x128xf32>
    %4 = vector.broadcast %3 : vector<1x128xf32> to vector<8x128xf32>
    %5 = arith.addf %2, %4 : vector<8x128xf32>
    %c0_5 = arith.constant 0 : index
    %c0_6 = arith.constant 0 : index
    %6 = vector.load %arg5[%c0_5, %c0_6] : memref<8x128xf32, #tpu.memory_space<vmem>>, vector<8x128xf32>
    %7 = arith.addf %5, %6 : vector<8x128xf32>
    %8 = math.tanh %7 : vector<8x128xf32>
    %c0_7 = arith.constant 0 : index
    %c0_8 = arith.constant 0 : index
    %9 = vector.load %arg6[%c0_7, %c0_8] : memref<8x128xf32, #tpu.memory_space<vmem>>, vector<8x128xf32>
    tpu.vector_store %arg6[%c0_7, %c0_8], %8 {strides = array<i32>} : memref<8x128xf32, #tpu.memory_space<vmem>>, vector<8x128xf32>,
    return
  }
  func.func @transform_0(%arg0: i32, %arg1: i32) -> (i32, i32) {
    %c0_i32 = arith.constant 0 : i32
    %c0_i32_0 = arith.constant 0 : i32
    return %arg0, %c0_i32 : i32, i32
  }
  func.func @transform_1(%arg0: i32, %arg1: i32) -> (i32, i32) {
    %c0_i32 = arith.constant 0 : i32
    %c0_i32_0 = arith.constant 0 : i32
    return %c0_i32, %arg1 : i32, i32
  }
  func.func @transform_2(%arg0: i32, %arg1: i32) -> (i32, i32) {
    %c0_i32 = arith.constant 0 : i32
    %c0_i32_0 = arith.constant 0 : i32
    return %c0_i32, %arg1 : i32, i32
  }
  func.func @transform_3(%arg0: i32, %arg1: i32) -> (i32, i32) {
    %c0_i32 = arith.constant 0 : i32
    return %arg0, %arg1 : i32, i32
  }
  func.func @transform_4(%arg0: i32, %arg1: i32) -> (i32, i32) {
    %c0_i32 = arith.constant 0 : i32
    return %arg0, %arg1 : i32, i32
  }
}

</mosaic_0001>

<llo_original>
// kernel: tpu_custom_call.1
$region0: #{tpu_custom_call.1}
  #allocation0 [shape = 'u32[]', space=smem, size = 0x4, offset = 0x4, fixed_abs, tag = 'smem constant byte address 0x4 - core index']
  #allocation1 [shape = 'u32[144,128]{1,0:T(1,128)}', space=vmem, size = 0x12000, scoped, tag = 'internal scratch']
  %s0 = inlined_call_operand.hbm [shape: f32[8,128], index: 0, kind: input, shape index: {}]
  %s1 = inlined_call_operand.hbm [shape: f32[128,128], index: 1, kind: input, shape index: {}]
  %s2 = inlined_call_operand.vmem [shape: f32[1,128], index: 2, kind: input, shape index: {}]
  %s3 = inlined_call_operand.hbm [shape: f32[8,128], index: 3, kind: input, shape index: {}]
  %s4 = inlined_call_operand.hbm [shape: f32[8,128], index: 4, kind: output, shape index: {}]
  %s5 = sld [smem:[#allocation0]]
  $region38: #{tpu_custom_call.1} parent=0
    _
  %s7 = ssub.s32 1, %s5
  %s8 = scalar_select 0, %s7, %s5
  $region1: #{tpu_custom_call.1} parent=0
    #allocation2 [shape = 'u8[4096]{0}', space=vmem, size = 0x1000, scoped, tag = 'input window, operand 0, single buffered']
    #allocation3 [shape = 's32[1]{0}', space=sflag, size = 0x4, scoped, tag = 'scoped memory for tpu_custom_call.1']
    #allocation4 [shape = 's32[1]{0}', space=sflag, size = 0x4, scoped, tag = 'scoped memory for tpu_custom_call.1']
    #allocation5 [shape = 'u8[65536]{0}', space=vmem, size = 0x10000, scoped, tag = 'input window, operand 1, single buffered']
    #allocation6 [shape = 's32[1]{0}', space=sflag, size = 0x4, scoped, tag = 'scoped memory for tpu_custom_call.1']
    #allocation7 [shape = 'u8[4096]{0}', space=vmem, size = 0x1000, scoped, tag = 'input window, operand 3, single buffered']
    #allocation8 [shape = 'u8[4096]{0}', space=vmem, size = 0x1000, scoped, tag = 'output window, operand 0, single buffered']
    %9 = vsyncpa [#allocation3], 0
    %10 = vsyncpa [#allocation6], 0
    %11 = vsyncpa [#allocation4], 0
    // Predicated region
    $region2: #{tpu_custom_call.1} parent=1 // pred_check
      _
    $region3: #{tpu_custom_call.1} parent=1 // pred_check_branch
      %13 = sbr.rel (0) target = $region5
    $region4: #{tpu_custom_call.1} parent=1 // pred_region
      %s15 = ssub.s32 128, 128
      %16 = vsyncadd [#allocation3], %s15
      %s18 = sshll.u32 [#allocation2], 4
      %s19 = int_to_ptr.vmem [resolvable:$true] %s18
      %21 = dma.hbm_to_vmem [thread:$0]  %s0, 128, %s19, [#allocation3]
    $region5: #{tpu_custom_call.1} parent=1 // pred_fallthru
      _
    // Predicated region
    $region6: #{tpu_custom_call.1} parent=1 // pred_check
      _
    $region7: #{tpu_custom_call.1} parent=1 // pred_check_branch
      %23 = sbr.rel (0) target = $region9
    $region8: #{tpu_custom_call.1} parent=1 // pred_region
      %s25 = ssub.s32 2048, 2048
      %26 = vsyncadd [#allocation6], %s25
      %s27 = sshll.u32 [#allocation5], 4
      %s28 = int_to_ptr.vmem [resolvable:$true] %s27
      %33 = dma.hbm_to_vmem [thread:$0]  %s1, 2048, %s28, [#allocation6], 128, 128, 8
    $region9: #{tpu_custom_call.1} parent=1 // pred_fallthru
      _
    // Predicated region
    $region10: #{tpu_custom_call.1} parent=1 // pred_check
      _
    $region11: #{tpu_custom_call.1} parent=1 // pred_check_branch
      %35 = sbr.rel (0) target = $region13
    $region12: #{tpu_custom_call.1} parent=1 // pred_region
      _
    $region13: #{tpu_custom_call.1} parent=1 // pred_fallthru
      _
    // Predicated region
    $region14: #{tpu_custom_call.1} parent=1 // pred_check
      _
    $region15: #{tpu_custom_call.1} parent=1 // pred_check_branch
      %37 = sbr.rel (0) target = $region17
    $region16: #{tpu_custom_call.1} parent=1 // pred_region
      %s39 = ssub.s32 128, 128
      %40 = vsyncadd [#allocation6], %s39
      %s42 = sshll.u32 [#allocation7], 4
      %s43 = int_to_ptr.vmem [resolvable:$true] %s42
      %45 = dma.hbm_to_vmem [thread:$0]  %s3, 128, %s43, [#allocation6]
    $region17: #{tpu_custom_call.1} parent=1 // pred_fallthru
      _
    // Predicated region
    $region18: #{tpu_custom_call.1} parent=1 // pred_check
      _
    $region19: #{tpu_custom_call.1} parent=1 // pred_check_branch
      %47 = sbr.rel (0) target = $region21
    $region20: #{tpu_custom_call.1} parent=1 // pred_region
      %48 = dma.done [#allocation3], 128
    $region21: #{tpu_custom_call.1} parent=1 // pred_fallthru
      _
    // Predicated region
    $region22: #{tpu_custom_call.1} parent=1 // pred_check
      _
    $region23: #{tpu_custom_call.1} parent=1 // pred_check_branch
      %50 = sbr.rel (0) target = $region25
    $region24: #{tpu_custom_call.1} parent=1 // pred_region
      %51 = dma.done [#allocation6], 2048
    $region25: #{tpu_custom_call.1} parent=1 // pred_fallthru
      _
    // Predicated region
    $region26: #{tpu_custom_call.1} parent=1 // pred_check
      _
    $region27: #{tpu_custom_call.1} parent=1 // pred_check_branch
      %53 = sbr.rel (0) target = $region29
    $region28: #{tpu_custom_call.1} parent=1 // pred_region
      %54 = dma.done [#allocation6], 128
    $region29: #{tpu_custom_call.1} parent=1 // pred_fallthru
      _
    %v55 = vld [vmem:[#allocation2] sm:$0xff]
    %v56 = vld [vmem:[#allocation5] sm:$0xff]
    %v57 = vld [vmem:[#allocation5 + $0x8] sm:$0xff]
    %v58 = vld [vmem:[#allocation5 + $0x10] sm:$0xff]
    %v59 = vld [vmem:[#allocation5 + $0x18] sm:$0xff]
    %v60 = vld [vmem:[#allocation5 + $0x20] sm:$0xff]
    %v61 = vld [vmem:[#allocation5 + $0x28] sm:$0xff]
    %v62 = vld [vmem:[#allocation5 + $0x30] sm:$0xff]
    %v63 = vld [vmem:[#allocation5 + $0x38] sm:$0xff]
    %v64 = vld [vmem:[#allocation5 + $0x40] sm:$0xff]
    %v65 = vld [vmem:[#allocation5 + $0x48] sm:$0xff]
    %v66 = vld [vmem:[#allocation5 + $0x50] sm:$0xff]
    %v67 = vld [vmem:[#allocation5 + $0x58] sm:$0xff]
    %v68 = vld [vmem:[#allocation5 + $0x60] sm:$0xff]
    %v69 = vld [vmem:[#allocation5 + $0x68] sm:$0xff]
    %v70 = vld [vmem:[#allocation5 + $0x70] sm:$0xff]
    %v71 = vld [vmem:[#allocation5 + $0x78] sm:$0xff]
    %v72 = vld [vmem:[%s2] sm:$0x1]
    %v74 = vlaneseq
    %v75 = vshrl.u32 %v74, 7
    %v76 = vsub.s32 0, %v75
    %v77 = vrot.slane %v72, %v76
    %79 = vmatprep.subr.mxu0 0.0
    %80 = vmatpush1.msra.mxu0 %v71
    %81 = vmatprep.subr.mxu0 0.0
    %82 = vmatpush1.msra.mxu0 %v70
    %83 = vmatprep.subr.mxu0 0.0
    %84 = vmatpush1.msra.mxu0 %v69
    %85 = vmatprep.subr.mxu0 0.0
    %86 = vmatpush1.msra.mxu0 %v68
    %87 = vmatprep.subr.mxu0 0.0
    %88 = vmatpush1.msra.mxu0 %v67
    %89 = vmatprep.subr.mxu0 0.0
    %90 = vmatpush1.msra.mxu0 %v66
    %91 = vmatprep.subr.mxu0 0.0
    %92 = vmatpush1.msra.mxu0 %v65
    %93 = vmatprep.subr.mxu0 0.0
    %94 = vmatpush1.msra.mxu0 %v64
    %95 = vmatprep.subr.mxu0 0.0
    %96 = vmatpush1.msra.mxu0 %v63
    %97 = vmatprep.subr.mxu0 0.0
    %98 = vmatpush1.msra.mxu0 %v62
    %99 = vmatprep.subr.mxu0 0.0
    %100 = vmatpush1.msra.mxu0 %v61
    %101 = vmatprep.subr.mxu0 0.0
    %102 = vmatpush1.msra.mxu0 %v60
    %103 = vmatprep.subr.mxu0 0.0
    %104 = vmatpush1.msra.mxu0 %v59
    %105 = vmatprep.subr.mxu0 0.0
    %106 = vmatpush1.msra.mxu0 %v58
    %107 = vmatprep.subr.mxu0 0.0
    %108 = vmatpush1.msra.mxu0 %v57
    %109 = vmatprep.subr.mxu0 0.0
    %110 = vmatpush1.msra.mxu0 %v56
    %111 = vmatprep.subr.mxu0 0.0
    %112 = vmatpush2.msra.mxu0 0.0
    %113 = vmatprep.subr.mxu0 0.0
    %114 = vmatpush2.msra.mxu0 0.0
    %115 = vmatprep.subr.mxu0 0.0
    %116 = vmatpush2.msra.mxu0 0.0
    %117 = vmatprep.subr.mxu0 0.0
    %118 = vmatpush2.msra.mxu0 0.0
    %119 = vmatprep.subr.mxu0 0.0
    %120 = vmatpush2.msra.mxu0 0.0
    %121 = vmatprep.subr.mxu0 0.0
    %122 = vmatpush2.msra.mxu0 0.0
    %123 = vmatprep.subr.mxu0 0.0
    %124 = vmatpush2.msra.mxu0 0.0
    %125 = vmatprep.subr.mxu0 0.0
    %126 = vmatpush2.msra.mxu0 0.0
    %127 = vmatprep.subr.mxu0 0.0
    %128 = vmatpush2.msra.mxu0 0.0
    %129 = vmatprep.subr.mxu0 0.0
    %130 = vmatpush2.msra.mxu0 0.0
    %131 = vmatprep.subr.mxu0 0.0
    %132 = vmatpush2.msra.mxu0 0.0
    %133 = vmatprep.subr.mxu0 0.0
    %134 = vmatpush2.msra.mxu0 0.0
    %135 = vmatprep.subr.mxu0 0.0
    %136 = vmatpush2.msra.mxu0 0.0
    %137 = vmatprep.subr.mxu0 0.0
    %138 = vmatpush2.msra.mxu0 0.0
    %139 = vmatprep.subr.mxu0 0.0
    %140 = vmatpush2.msra.mxu0 0.0
    %141 = vmatprep.subr.mxu0 0.0
    %142 = vmatpush2.msra.mxu0 0.0
    %143 = vmatprep.mubr.f32.mxu0 0.0
    %144 = vmatmul.mubr.f32.gmra.mxu0 %v55
    %v145 = vpop.f32.mrf.mxu0
    %v146 = vadd.f32 %v77, %v145
    %v147 = vpop.f32.mrf.mxu0
    %148 = vdwg.mxu0
    %v149 = vld [vmem:[#allocation7] sm:$0xff]
    %v150 = vadd.f32 %v146, %v149
    %v151 = vtanh.pop %v150
    %152 = vst [vmem:[#allocation8] sm:$0xff] %v151
    // Predicated region
    $region30: #{tpu_custom_call.1} parent=1 // pred_check
      _
    $region31: #{tpu_custom_call.1} parent=1 // pred_check_branch
      %154 = sbr.rel (0) target = $region33
    $region32: #{tpu_custom_call.1} parent=1 // pred_region
      %s156 = ssub.s32 128, 128
      %157 = vsyncadd [#allocation4], %s156
      %s159 = sshll.u32 [#allocation8], 4
      %s160 = int_to_ptr.vmem [resolvable:$true] %s159
      %162 = dma.vmem_to_hbm [thread:$0]  %s160, 128, %s4, [#allocation4]
    $region33: #{tpu_custom_call.1} parent=1 // pred_fallthru
      _
    // Predicated region
    $region34: #{tpu_custom_call.1} parent=1 // pred_check
      _
    $region35: #{tpu_custom_call.1} parent=1 // pred_check_branch
      %164 = sbr.rel (0) target = $region37
    $region36: #{tpu_custom_call.1} parent=1 // pred_region
      %165 = dma.done [#allocation4], 128
    $region37: #{tpu_custom_call.1} parent=1 // pred_fallthru
      _
    %166 = vsyncpa [#allocation3], 1
    %167 = vsyncpa [#allocation6], 1
    %168 = vsyncpa [#allocation4], 1

</llo_original>
